<compile_context>
chip_gen: v5e
topology: v5e:2x2
jax: 0.10.0
libtpu: 0.0.40
codegen_flags: <defaults>
</compile_context>

<pallas_src>
import functools
import math

import jax
import jax.numpy as jnp
from jax.experimental import pallas as pl
from jax.experimental.pallas import tpu as pltpu

FC1_IN = 512 * 7 * 7          # 25088
FC1_OUT = 4086
NUM_CLASSES = 1623


def _round_up(x, m):
    return (x + m - 1) // m * m


FC1_OUT_PAD = _round_up(FC1_OUT, 128)          # 4096
NUM_CLASSES_PAD = _round_up(NUM_CLASSES, 128)  # 1664


def _fused_matmul_kernel(x_ref, w_ref, shift_ref, o_ref, *scratch, relu, nk):
    """Y = act(X @ W + shift).  K-axis is grid dim 2 (nk steps, f32 acc)."""
    if nk == 1:
        y = jnp.dot(x_ref[...], w_ref[...], preferred_element_type=jnp.float32)
        y = y + shift_ref[...]
        if relu:
            y = jnp.maximum(y, 0.0)
        o_ref[...] = y.astype(o_ref.dtype)
    else:
        acc_ref, = scratch

        @pl.when(pl.program_id(2) == 0)
        def _():
            acc_ref[...] = jnp.zeros_like(acc_ref)

        acc_ref[...] += jnp.dot(x_ref[...], w_ref[...],
                                preferred_element_type=jnp.float32)

        @pl.when(pl.program_id(2) == nk - 1)
        def _():
            y = acc_ref[...] + shift_ref[...]
            if relu:
                y = jnp.maximum(y, 0.0)
            o_ref[...] = y.astype(o_ref.dtype)


def fused_matmul(x, w, shift, *, relu, out_dtype=jnp.bfloat16):
    """act((x @ w) + shift); shift broadcast per output column.

    x: (M, K) any float dtype (cast to bf16), w: (K, N) bf16, shift: (N,) f32.
    """
    M, K = x.shape
    K2, N = w.shape
    assert K == K2, (K, K2)

    # --- per-call tile selection -------------------------------------------
    tm = min(512, _round_up(M, 8))
    # small-M (FC) path: wide N tiles so the weight is streamed exactly once
    # and X is re-read only Np/tn (<=2) times; conv path: 512-wide cap.
    tn = min(2048 if M <= 16 else 512, _round_up(N, 128))
    kp = _round_up(K, 128)
    if kp > 2304:
        tk = 512
        kp = _round_up(K, tk)
    else:
        tk = kp                      # single K step, no accumulator needed

    Mp = _round_up(M, tm)
    Np = _round_up(N, tn)
    Kp = kp
    nk = Kp // tk

    xp = x.astype(jnp.bfloat16)
    if (Mp, Kp) != (M, K):
        xp = jnp.pad(xp, ((0, Mp - M), (0, Kp - K)))
    wp = w.astype(jnp.bfloat16)
    if (Kp, Np) != (K, N):
        wp = jnp.pad(wp, ((0, Kp - K), (0, Np - N)))
    sp = shift.reshape(1, -1).astype(jnp.float32)
    if Np != N:
        sp = jnp.pad(sp, ((0, 0), (0, Np - N)))

    kernel = functools.partial(_fused_matmul_kernel, relu=relu, nk=nk)
    flops = 2 * M * N * K
    bytes_accessed = int(Mp * Kp * 2 * (Np // tn)       # X re-streamed per j
                         + Kp * Np * 2                   # W streamed once
                         + Mp * Np * jnp.dtype(out_dtype).itemsize)

    out = pl.pallas_call(
        kernel,
        out_shape=jax.ShapeDtypeStruct((Mp, Np), out_dtype),
        grid_spec=pltpu.PrefetchScalarGridSpec(
            num_scalar_prefetch=0,
            grid=(Mp // tm, Np // tn, nk),
            in_specs=[
                pl.BlockSpec((tm, tk), lambda i, j, k: (i, k)),
                pl.BlockSpec((tk, tn), lambda i, j, k: (k, j)),
                pl.BlockSpec((1, tn), lambda i, j, k: (0, j)),
            ],
            out_specs=pl.BlockSpec((tm, tn), lambda i, j, k: (i, j)),
            scratch_shapes=([pltpu.VMEM((tm, tn), jnp.float32)]
                            if nk > 1 else []),
        ),
        compiler_params=pltpu.CompilerParams(
            dimension_semantics=("parallel", "parallel", "arbitrary")),
        cost_estimate=pl.CostEstimate(flops=flops, transcendentals=0,
                                      bytes_accessed=bytes_accessed),
    )(xp, wp, sp)
    return out[:M, :N]


def im2col(x_nhwc, ksize=3, stride=2, pad=1):
    """(N,H,W,C) -> (N*OH*OW, KH*KW*C) patches with (kh, kw, cin) order."""
    N, H, W, C = x_nhwc.shape
    xp = jnp.pad(x_nhwc, ((0, 0), (pad, pad), (pad, pad), (0, 0)))
    OH = (H + 2 * pad - ksize) // stride + 1
    OW = (W + 2 * pad - ksize) // stride + 1
    cols = []
    for kh in range(ksize):
        for kw in range(ksize):
            cols.append(xp[:, kh:kh + stride * OH:stride,
                           kw:kw + stride * OW:stride, :])
    patches = jnp.stack(cols, axis=3)            # (N, OH, OW, KH*KW, C)
    return patches.reshape(N * OH * OW, ksize * ksize * C), OH, OW


def init_params(key):
    """Builds inference-ready params: conv GEMM mats with BN folded, FC
    weights pre-transposed to (in, out), pre-padded, all in bf16."""
    eps = 1e-5
    conv_chs = [(1, 64), (64, 128), (128, 256), (256, 512)]
    keys = jax.random.split(key, 12)
    ki = 0
    params = {}
    for li, (cin, cout) in enumerate(conv_chs):
        fan_in = cin * 9
        w = jax.random.normal(keys[ki], (cout, cin, 3, 3),
                              jnp.float32) / math.sqrt(fan_in)
        ki += 1
        b = 0.01 * jax.random.normal(keys[ki], (cout,), jnp.float32)
        ki += 1
        gamma = jnp.ones((cout,), jnp.float32)
        beta = jnp.zeros((cout,), jnp.float32)
        mean = jnp.zeros((cout,), jnp.float32)
        var = jnp.ones((cout,), jnp.float32)
        # Fold conv bias + BN(inference) into per-column scale/shift; fold the
        # scale into the GEMM weight (done ONCE, here).
        s = gamma / jnp.sqrt(var + eps)
        shift = (b - mean) * s + beta
        w_mat = jnp.transpose(w, (2, 3, 1, 0)).reshape(9 * cin, cout) * s[None, :]
        params[f"conv{li}"] = dict(w=w_mat.astype(jnp.bfloat16), shift=shift)

    # FC1: stored as (in, out) = (25088, 4096-padded), bf16.
    w1 = jax.random.normal(keys[ki], (FC1_IN, FC1_OUT),
                           jnp.bfloat16) * (1.0 / math.sqrt(FC1_IN))
    ki += 1
    b1 = 0.01 * jax.random.normal(keys[ki], (FC1_OUT,), jnp.float32)
    ki += 1
    params["fc1"] = dict(
        w=jnp.pad(w1, ((0, 0), (0, FC1_OUT_PAD - FC1_OUT))),
        b=jnp.pad(b1, (0, FC1_OUT_PAD - FC1_OUT)))

    # FC2: stored as (in, out) = (4096-padded, 1664-padded), bf16.
    w2 = jax.random.normal(keys[ki], (FC1_OUT, NUM_CLASSES),
                           jnp.bfloat16) * (1.0 / math.sqrt(FC1_OUT))
    ki += 1
    b2 = 0.01 * jax.random.normal(keys[ki], (NUM_CLASSES,), jnp.float32)
    ki += 1
    params["fc2"] = dict(
        w=jnp.pad(w2, ((0, FC1_OUT_PAD - FC1_OUT),
                       (0, NUM_CLASSES_PAD - NUM_CLASSES))),
        b=jnp.pad(b2, (0, NUM_CLASSES_PAD - NUM_CLASSES)))
    return params


def forward(params, x_nchw):
    # NCHW -> NHWC, bf16 internal layout.
    x = jnp.transpose(x_nchw, (0, 2, 3, 1)).astype(jnp.bfloat16)
    batch = x.shape[0]
    for i in range(4):
        c = params[f"conv{i}"]
        patches, OH, OW = im2col(x, ksize=3, stride=2, pad=1)
        y = fused_matmul(patches, c["w"], c["shift"], relu=True,
                         out_dtype=jnp.bfloat16)
        x = y.reshape(batch, OH, OW, c["w"].shape[1])

    # PyTorch Flatten acts on NCHW -> (N, C*H*W): transpose back then flatten.
    x = jnp.transpose(x, (0, 3, 1, 2)).reshape(batch, -1)     # (N, 25088) bf16

    # FC1 -> (N, 4096) padded output (padded cols are exact zeros).
    h = fused_matmul(x, params["fc1"]["w"], params["fc1"]["b"], relu=False,
                     out_dtype=jnp.bfloat16)
    # FC2 -> (N, 1664) padded, slice to true class count.
    y = fused_matmul(h, params["fc2"]["w"], params["fc2"]["b"], relu=False,
                     out_dtype=jnp.float32)
    return y[:, :NUM_CLASSES]


if __name__ == "__main__":
    key = jax.random.PRNGKey(0)
    pkey, xkey = jax.random.split(key)
    params = init_params(pkey)
    # Spatial size must be 112x112 so that 4 stride-2 convs give 7x7, as
    # required by Linear(512*7*7, ...).  Batch kept small (2), 1 input channel.
    x = jax.random.normal(xkey, (2, 1, 112, 112), jnp.float32)
    out = forward(params, x)
    jax.block_until_ready(out)
    assert out.shape == (2, NUM_CLASSES), out.shape
    assert bool(jnp.all(jnp.isfinite(out)))
    print("KERNEL_OK")
</pallas_src>

<mosaic_0001>
module attributes {stable_mosaic.version = 11 : i64} {
  func.func @_fused_matmul_kernel(%arg0: i32, %arg1: i32, %arg2: i32, %arg3: memref<512x128xbf16, #tpu.memory_space<vmem>>, %arg4: memref<128x128xbf16, #tpu.memory_space<vmem>>, %arg5: memref<1x128xf32, #tpu.memory_space<vmem>>, %arg6: memref<512x128xbf16, #tpu.memory_space<vmem>>) attributes {dimension_semantics = [#tpu.dimension_semantics<parallel>, #tpu.dimension_semantics<parallel>, #tpu.dimension_semantics<arbitrary>], iteration_bounds = array<i64: 13, 1, 1>, scalar_prefetch = 0 : i64, scratch_operands = 0 : i64, tpu.core_type = #tpu.core_type<tc>, window_params = [{transform_indices = @transform_0, window_bounds = array<i64: 512, 128>}, {transform_indices = @transform_1, window_bounds = array<i64: 128, 128>}, {transform_indices = @transform_2, window_bounds = array<i64: 1, 128>}, {transform_indices = @transform_3, window_bounds = array<i64: 512, 128>}]} {
    %c0 = arith.constant 0 : index
    %c0_0 = arith.constant 0 : index
    %0 = vector.load %arg3[%c0, %c0_0] : memref<512x128xbf16, #tpu.memory_space<vmem>>, vector<512x128xbf16>
    %c0_1 = arith.constant 0 : index
    %c0_2 = arith.constant 0 : index
    %1 = vector.load %arg4[%c0_1, %c0_2] : memref<128x128xbf16, #tpu.memory_space<vmem>>, vector<128x128xbf16>
    %cst = arith.constant dense<0.000000e+00> : vector<512x128xf32>
    %2 = tpu.matmul %0, %1, %cst {dimension_numbers = #tpu.dot_dimension_numbers<[1], [0], [0], [1], [0, 0, 1, 1], [], []>} : vector<512x128xbf16>, vector<128x128xbf16>, vector<512x128xf32> -> vector<512x128xf32>
    %c0_3 = arith.constant 0 : index
    %c0_4 = arith.constant 0 : index
    %3 = vector.load %arg5[%c0_3, %c0_4] : memref<1x128xf32, #tpu.memory_space<vmem>>, vector<1x128xf32>
    %4 = vector.broadcast %3 : vector<1x128xf32> to vector<512x128xf32>
    %5 = arith.addf %2, %4 : vector<512x128xf32>
    %cst_5 = arith.constant 0.000000e+00 : f32
    %6 = vector.broadcast %cst_5 : f32 to vector<512x128xf32>
    %7 = arith.maximumf %5, %6 : vector<512x128xf32>
    %8 = arith.truncf %7 : vector<512x128xf32> to vector<512x128xbf16>
    %c0_6 = arith.constant 0 : index
    %c0_7 = arith.constant 0 : index
    %9 = vector.load %arg6[%c0_6, %c0_7] : memref<512x128xbf16, #tpu.memory_space<vmem>>, vector<512x128xbf16>
    tpu.vector_store %arg6[%c0_6, %c0_7], %8 {strides = array<i32>} : memref<512x128xbf16, #tpu.memory_space<vmem>>, vector<512x128xbf16>,
    return
  }
  func.func @transform_0(%arg0: i32, %arg1: i32, %arg2: i32) -> (i32, i32) {
    %c0_i32 = arith.constant 0 : i32
    return %arg0, %arg2 : i32, i32
  }
  func.func @transform_1(%arg0: i32, %arg1: i32, %arg2: i32) -> (i32, i32) {
    %c0_i32 = arith.constant 0 : i32
    return %arg2, %arg1 : i32, i32
  }
  func.func @transform_2(%arg0: i32, %arg1: i32, %arg2: i32) -> (i32, i32) {
    %c0_i32 = arith.constant 0 : i32
    %c0_i32_0 = arith.constant 0 : i32
    return %c0_i32, %arg1 : i32, i32
  }
  func.func @transform_3(%arg0: i32, %arg1: i32, %arg2: i32) -> (i32, i32) {
    %c0_i32 = arith.constant 0 : i32
    return %arg0, %arg1 : i32, i32
  }
}

</mosaic_0001>

<llo_original>
// kernel: tpu_custom_call.1
$region0: #{tpu_custom_call.1}
  #allocation0 [shape = 'u32[]', space=smem, size = 0x4, offset = 0x4, fixed_abs, tag = 'smem constant byte address 0x4 - core index']
  #allocation1 [shape = 'u32[72,128]{1,0:T(1,128)}', space=vmem, size = 0x9000, scoped, tag = 'internal scratch']
  %s0 = inlined_call_operand.hbm [shape: bf16[6656,128], index: 0, kind: input, shape index: {}]
  %s1 = inlined_call_operand.hbm [shape: bf16[128,128], index: 1, kind: input, shape index: {}]
  %s2 = inlined_call_operand.hbm [shape: f32[1,128], index: 2, kind: input, shape index: {}]
  %s3 = inlined_call_operand.hbm [shape: bf16[6656,128], index: 3, kind: output, shape index: {}]
  %s4 = sld [smem:[#allocation0]]
  $region57: #{tpu_custom_call.1} parent=0
    _
  %s6 = ssub.s32 1, %s4
  %s7 = scalar_select 0, %s6, %s4
  $region1: #{tpu_custom_call.1} parent=0
    #allocation2 [shape = 'u8[262144]{0}', space=vmem, size = 0x40000, scoped, tag = 'input window, operand 0']
    #allocation3 [shape = 's32[2]{0}', space=sflag, size = 0x8, scoped, tag = 'scoped memory for tpu_custom_call.1']
    #allocation4 [shape = 's32[2]{0}', space=sflag, size = 0x8, scoped, tag = 'scoped memory for tpu_custom_call.1']
    #allocation5 [shape = 'u8[32768]{0}', space=vmem, size = 0x8000, scoped, tag = 'input window, operand 1, single buffered']
    #allocation6 [shape = 's32[1]{0}', space=sflag, size = 0x4, scoped, tag = 'scoped memory for tpu_custom_call.1']
    #allocation7 [shape = 'u8[512]{0}', space=vmem, size = 0x400, scoped, tag = 'input window, operand 2, single buffered']
    #allocation8 [shape = 'u8[262144]{0}', space=vmem, size = 0x40000, scoped, tag = 'output window, operand 0']
    %8 = vsyncpa [#allocation3], 0
    %s9 = scalar_lea.sflag [#allocation3], 1
    %10 = vsyncpa %s9, 0
    %11 = vsyncpa [#allocation6], 0
    %12 = vsyncpa [#allocation4], 0
    %s13 = scalar_lea.sflag [#allocation4], 1
    %14 = vsyncpa %s13, 0
    loop: start=0, step=1, limit=15
    $region2: #{tpu_custom_call.1} parent=1 // loop_pre_header
      _
    $region3: #{tpu_custom_call.1} parent=1 // loop_header
      %s16 = sphi 0, %s20
      %p17 = scmp.ge.s32.totalorder %s16, 15
      %s23 = sphi 0, %s42
      %s24 = sphi 0, %s38
      %s25 = sphi 0, %s34
      %s26 = sphi 0, %s23
      %s27 = sphi 0, %s24
      %s28 = sphi 0, %s25
      %s29 = sphi 0, %s26
      %s30 = sphi 0, %s27
      %s31 = sphi 0, %s28
      %s47 = sphi 0, %s49
      %s50 = sphi 0, %s47
      %s51 = sphi 0, %s50
      %s67 = sphi 0, %s51
      %s75 = sphi 0, %s77
      %s78 = sphi 0, %s75
      %s79 = sphi 0, %s78
      %s95 = sphi 0, %s79
      %s101 = sphi 0, %s103
      %s104 = sphi 0, %s101
      %s105 = sphi 0, %s104
      %s121 = sphi 0, %s105
      %s129 = sphi 0, %s131
      %s132 = sphi 0, %s129
      %s133 = sphi 0, %s132
      %s149 = sphi 0, %s133
    $region4: #{tpu_custom_call.1} parent=1 // loop_header_branch
      %19 = sbr.rel (%p17) target = $region8
    $region5: #{tpu_custom_call.1} parent=1 // loop_body
      %s21 = ssub.s32 %s16, 1
      %s22 = ssub.s32 %s16, 2
      %s32 = sadd.s32 1, %s25
      %p33 = scmp.ge.s32.totalorder %s32, 1
      %s34 = scalar_select %p33, 0, %s32
      %s35 = sadd.s32 1, %s24
      %s36 = scalar_select %p33, %s35, %s24
      %p37 = scmp.ge.s32.totalorder %s36, 1
      %s38 = scalar_select %p37, 0, %s36
      %s39 = sadd.s32 1, %s23
      %s40 = scalar_select %p37, %s39, %s23
      %p41 = scmp.ge.s32.totalorder %s40, 13
      %s42 = scalar_select %p41, 0, %s40
      %s43 = ssub.s32 %s23, %s42
      %s44 = ssub.s32 %s25, %s34
      %s45 = sor.u32 %s43, %s44
      %p46 = scmp.eq.s32.totalorder %s45, 0
      %s48 = sadd.s32 %s47, 1
      %s49 = scalar_select %p46, %s47, %s48
      %p52 = pneg %p46
      %p53 = scmp.eq.s32.totalorder %s16, 12
      %p54 = por %p52, %p53
      %p55 = scmp.ne.s32.totalorder %s47, %s50
      %p56 = scmp.eq.s32.totalorder %s16, 0
      %p57 = por %p55, %p56
      %p58 = scmp.ne.s32.totalorder %s47, %s50
      %p59 = scmp.eq.s32.totalorder %s21, 12
      %p60 = por %p58, %p59
      %p61 = scmp.ne.s32.totalorder %s50, %s51
      %p62 = scmp.eq.s32.totalorder %s21, 0
      %p63 = por %p61, %p62
      %p64 = scmp.ne.s32.totalorder %s50, %s51
      %p65 = scmp.eq.s32.totalorder %s22, 12
      %p66 = por %p64, %p65
      %p68 = scmp.ne.s32.totalorder %s51, %s67
      %p69 = scmp.eq.s32.totalorder %s22, 0
      %p70 = por %p68, %p69
      %s71 = ssub.s32 %s25, %s34
      %s72 = ssub.s32 %s24, %s38
      %s73 = sor.u32 %s71, %s72
      %p74 = scmp.eq.s32.totalorder %s73, 0
      %s76 = sadd.s32 %s75, 1
      %s77 = scalar_select %p74, %s75, %s76
      %p80 = pneg %p74
      %p81 = scmp.eq.s32.totalorder %s16, 12
      %p82 = por %p80, %p81
      %p83 = scmp.ne.s32.totalorder %s75, %s78
      %p84 = scmp.eq.s32.totalorder %s16, 0
      %p85 = por %p83, %p84
      %p86 = scmp.ne.s32.totalorder %s75, %s78
      %p87 = scmp.eq.s32.totalorder %s21, 12
      %p88 = por %p86, %p87
      %p89 = scmp.ne.s32.totalorder %s78, %s79
      %p90 = scmp.eq.s32.totalorder %s21, 0
      %p91 = por %p89, %p90
      %p92 = scmp.ne.s32.totalorder %s78, %s79
      %p93 = scmp.eq.s32.totalorder %s22, 12
      %p94 = por %p92, %p93
      %p96 = scmp.ne.s32.totalorder %s79, %s95
      %p97 = scmp.eq.s32.totalorder %s22, 0
      %p98 = por %p96, %p97
      %s99 = ssub.s32 %s24, %s38
      %p100 = scmp.eq.s32.totalorder %s99, 0
      %s102 = sadd.s32 %s101, 1
      %s103 = scalar_select %p100, %s101, %s102
      %p106 = pneg %p100
      %p107 = scmp.eq.s32.totalorder %s16, 12
      %p108 = por %p106, %p107
      %p109 = scmp.ne.s32.totalorder %s101, %s104
      %p110 = scmp.eq.s32.totalorder %s16, 0
      %p111 = por %p109, %p110
      %p112 = scmp.ne.s32.totalorder %s101, %s104
      %p113 = scmp.eq.s32.totalorder %s21, 12
      %p114 = por %p112, %p113
      %p115 = scmp.ne.s32.totalorder %s104, %s105
      %p116 = scmp.eq.s32.totalorder %s21, 0
      %p117 = por %p115, %p116
      %p118 = scmp.ne.s32.totalorder %s104, %s105
      %p119 = scmp.eq.s32.totalorder %s22, 12
      %p120 = por %p118, %p119
      %p122 = scmp.ne.s32.totalorder %s105, %s121
      %p123 = scmp.eq.s32.totalorder %s22, 0
      %p124 = por %p122, %p123
      %s125 = ssub.s32 %s23, %s42
      %s126 = ssub.s32 %s24, %s38
      %s127 = sor.u32 %s125, %s126
      %p128 = scmp.eq.s32.totalorder %s127, 0
      %s130 = sadd.s32 %s129, 1
      %s131 = scalar_select %p128, %s129, %s130
      %p134 = pneg %p128
      %p135 = scmp.eq.s32.totalorder %s16, 12
      %p136 = por %p134, %p135
      %p137 = scmp.ne.s32.totalorder %s129, %s132
      %p138 = scmp.eq.s32.totalorder %s16, 0
      %p139 = por %p137, %p138
      %p140 = scmp.ne.s32.totalorder %s129, %s132
      %p141 = scmp.eq.s32.totalorder %s21, 12
      %p142 = por %p140, %p141
      %p143 = scmp.ne.s32.totalorder %s132, %s133
      %p144 = scmp.eq.s32.totalorder %s21, 0
      %p145 = por %p143, %p144
      %p146 = scmp.ne.s32.totalorder %s132, %s133
      %p147 = scmp.eq.s32.totalorder %s22, 12
      %p148 = por %p146, %p147
      %p150 = scmp.ne.s32.totalorder %s133, %s149
      %p151 = scmp.eq.s32.totalorder %s22, 0
      %p152 = por %p150, %p151
      %p153 = scmp.le.s32.totalorder 1, %s16
      %p154 = scmp.lt.s32.totalorder %s16, 14
      %p155 = pnand %p153, %p154
      %p156 = pneg %p155
      // Predicated region
      $region9: #{tpu_custom_call.1} parent=5 // pred_check
        _
      $region10: #{tpu_custom_call.1} parent=5 // pred_check_branch
        %158 = sbr.rel (%p155) target = $region12
      $region11: #{tpu_custom_call.1} parent=5 // pred_region
        %s159 = ssub.s32 %s16, 1
        // Predicated region
        $region13: #{tpu_custom_call.1} parent=11 // pred_check
          %p160 = pneg %p91
        $region14: #{tpu_custom_call.1} parent=11 // pred_check_branch
          %162 = sbr.rel (%p160) target = $region16
        $region15: #{tpu_custom_call.1} parent=11 // pred_region
          %s163 = smul.u32 16, %s28
          %165 = vsyncadd [#allocation6], 0
          %s166 = sadd.s32 %s27, %s163
          %s167 = smul.addr %s166, 4
          %s168 = scalar_lea.hbm %s1, %s167
          %s169 = sshll.u32 %s168, 4
          %s170 = int_to_ptr.hbm [resolvable:$true] %s169
          %s171 = sshll.u32 [#allocation5], 4
          %s172 = int_to_ptr.vmem [resolvable:$true] %s171
          %177 = dma.hbm_to_vmem [thread:$0]  %s170, 1024, %s172, [#allocation6], 64, 64, 4
        $region16: #{tpu_custom_call.1} parent=11 // pred_fallthru
          _
        // Predicated region
        $region17: #{tpu_custom_call.1} parent=11 // pred_check
          %p178 = pneg %p117
        $region18: #{tpu_custom_call.1} parent=11 // pred_check_branch
          %180 = sbr.rel (%p178) target = $region20
        $region19: #{tpu_custom_call.1} parent=11 // pred_region
          %182 = vsyncadd [#allocation6], 0
          %s183 = scalar_lea.hbm %s2, %s27
          %s185 = sshll.u32 %s183, 4
          %s186 = int_to_ptr.hbm [resolvable:$true] %s185
          %s187 = sshll.u32 [#allocation7], 4
          %s188 = int_to_ptr.vmem [resolvable:$true] %s187
          %190 = dma.hbm_to_vmem [thread:$0]  %s186, 16, %s188, [#allocation6]
        $region20: #{tpu_custom_call.1} parent=11 // pred_fallthru
          _
      $region12: #{tpu_custom_call.1} parent=5 // pred_fallthru
        _
      %p191 = scmp.lt.s32.totalorder %s16, 13
      // Predicated region
      $region21: #{tpu_custom_call.1} parent=5 // pred_check
        %p192 = pneg %p191
      $region22: #{tpu_custom_call.1} parent=5 // pred_check_branch
        %194 = sbr.rel (%p192) target = $region24
      $region23: #{tpu_custom_call.1} parent=5 // pred_region
        // Predicated region
        $region25: #{tpu_custom_call.1} parent=23 // pred_check
          %p195 = pneg %p57
        $region26: #{tpu_custom_call.1} parent=23 // pred_check_branch
          %197 = sbr.rel (%p195) target = $region28
        $region27: #{tpu_custom_call.1} parent=23 // pred_region
          %s198 = sand.u32 %s47, 1
          %s199 = scalar_lea.sflag [#allocation3], %s198
          %s200 = sand.u32 %s47, 1
          %s201 = smul.addr %s200, 256
          %s202 = scalar_lea.vmem [#allocation2], %s201
          %s203 = smul.u32 64, %s23
          %205 = vsyncadd %s199, 0
          %s206 = sadd.s32 %s25, %s203
          %s207 = smul.addr %s206, 4
          %s208 = scalar_lea.hbm %s0, %s207
          %s209 = sshll.u32 %s208, 4
          %s210 = int_to_ptr.hbm [resolvable:$true] %s209
          %s211 = sshll.u32 %s202, 4
          %s212 = int_to_ptr.vmem [resolvable:$true] %s211
          %217 = dma.hbm_to_vmem [thread:$0]  %s210, 4096, %s212, %s199, 64, 64, 4
        $region28: #{tpu_custom_call.1} parent=23 // pred_fallthru
          _
      $region24: #{tpu_custom_call.1} parent=5 // pred_fallthru
        _
      %p218 = scmp.le.s32.totalorder 1, %s16
      %p219 = scmp.lt.s32.totalorder %s16, 14
      %p220 = pnand %p218, %p219
      %p221 = pneg %p220
      // Predicated region
      $region29: #{tpu_custom_call.1} parent=5 // pred_check
        _
      $region30: #{tpu_custom_call.1} parent=5 // pred_check_branch
        %223 = sbr.rel (%p220) target = $region32
      $region31: #{tpu_custom_call.1} parent=5 // pred_region
        %s224 = ssub.s32 %s16, 1
        %s225 = sand.u32 %s50, 1
        %s226 = scalar_lea.sflag [#allocation3], %s225
        %s227 = sand.u32 %s50, 1
        %s228 = smul.addr %s227, 256
        %s229 = scalar_lea.vmem [#allocation2], %s228
        // Predicated region
        $region33: #{tpu_custom_call.1} parent=31 // pred_check
          %p230 = pneg %p63
        $region34: #{tpu_custom_call.1} parent=31 // pred_check_branch
          %232 = sbr.rel (%p230) target = $region36
        $region35: #{tpu_custom_call.1} parent=31 // pred_region
          %234 = dma.done %s226, 4096
        $region36: #{tpu_custom_call.1} parent=31 // pred_fallthru
          _
        // Predicated region
        $region37: #{tpu_custom_call.1} parent=31 // pred_check
          %p235 = pneg %p91
        $region38: #{tpu_custom_call.1} parent=31 // pred_check_branch
          %237 = sbr.rel (%p235) target = $region40
        $region39: #{tpu_custom_call.1} parent=31 // pred_region
          %239 = dma.done [#allocation6], 1024
        $region40: #{tpu_custom_call.1} parent=31 // pred_fallthru
          _
        // Predicated region
        $region41: #{tpu_custom_call.1} parent=31 // pred_check
          %p240 = pneg %p117
        $region42: #{tpu_custom_call.1} parent=31 // pred_check_branch
          %242 = sbr.rel (%p240) target = $region44
        $region43: #{tpu_custom_call.1} parent=31 // pred_region
          %244 = dma.done [#allocation6], 16
        $region44: #{tpu_custom_call.1} parent=31 // pred_fallthru
          _
        %s245 = sand.u32 %s50, 1
        %s246 = scalar_lea.sflag [#allocation3], %s245
        %s247 = sand.u32 %s50, 1
        %s248 = smul.addr %s247, 256
        %s249 = scalar_lea.vmem [#allocation2], %s248
        %p250 = pneg %p63
        %p251 = pneg %p60
        %p252 = pneg %p91
        %p253 = pneg %p88
        %p254 = pneg %p117
        %p255 = pneg %p114
        %p256 = pneg %p145
        %p257 = pneg %p142
        %s258 = sand.u32 %s132, 1
        %s259 = scalar_lea.sflag [#allocation4], %s258
        %s260 = sand.u32 %s132, 1
        %s261 = smul.addr %s260, 256
        %s262 = scalar_lea.vmem [#allocation8], %s261
        %s263 = smul.u32 64, %s26
        %s264 = smul.u32 16, %s28
        %s265 = smul.u32 64, %s26
        %v266 = vld [vmem:[%s229] sm:$0xf]
        %v267 = vld [vmem:[%s229 + $0x4] sm:$0xf]
        %v268 = vld [vmem:[%s229 + $0x8] sm:$0xf]
        %v269 = vld [vmem:[%s229 + $0xc] sm:$0xf]
        %v270 = vld [vmem:[%s229 + $0x10] sm:$0xf]
        %v271 = vld [vmem:[%s229 + $0x14] sm:$0xf]
        %v272 = vld [vmem:[%s229 + $0x18] sm:$0xf]
        %v273 = vld [vmem:[%s229 + $0x1c] sm:$0xf]
        %v274 = vld [vmem:[%s229 + $0x20] sm:$0xf]
        %v275 = vld [vmem:[%s229 + $0x24] sm:$0xf]
        %v276 = vld [vmem:[%s229 + $0x28] sm:$0xf]
        %v277 = vld [vmem:[%s229 + $0x2c] sm:$0xf]
        %v278 = vld [vmem:[%s229 + $0x30] sm:$0xf]
        %v279 = vld [vmem:[%s229 + $0x34] sm:$0xf]
        %v280 = vld [vmem:[%s229 + $0x38] sm:$0xf]
        %v281 = vld [vmem:[%s229 + $0x3c] sm:$0xf]
        %v282 = vld [vmem:[%s229 + $0x40] sm:$0xf]
        %v283 = vld [vmem:[%s229 + $0x44] sm:$0xf]
        %v284 = vld [vmem:[%s229 + $0x48] sm:$0xf]
        %v285 = vld [vmem:[%s229 + $0x4c] sm:$0xf]
        %v286 = vld [vmem:[%s229 + $0x50] sm:$0xf]
        %v287 = vld [vmem:[%s229 + $0x54] sm:$0xf]
        %v288 = vld [vmem:[%s229 + $0x58] sm:$0xf]
        %v289 = vld [vmem:[%s229 + $0x5c] sm:$0xf]
        %v290 = vld [vmem:[%s229 + $0x60] sm:$0xf]
        %v291 = vld [vmem:[%s229 + $0x64] sm:$0xf]
        %v292 = vld [vmem:[%s229 + $0x68] sm:$0xf]
        %v293 = vld [vmem:[%s229 + $0x6c] sm:$0xf]
        %v294 = vld [vmem:[%s229 + $0x70] sm:$0xf]
        %v295 = vld [vmem:[%s229 + $0x74] sm:$0xf]
        %v296 = vld [vmem:[%s229 + $0x78] sm:$0xf]
        %v297 = vld [vmem:[%s229 + $0x7c] sm:$0xf]
        %v298 = vld [vmem:[%s229 + $0x80] sm:$0xf]
        %v299 = vld [vmem:[%s229 + $0x84] sm:$0xf]
        %v300 = vld [vmem:[%s229 + $0x88] sm:$0xf]
        %v301 = vld [vmem:[%s229 + $0x8c] sm:$0xf]
        %v302 = vld [vmem:[%s229 + $0x90] sm:$0xf]
        %v303 = vld [vmem:[%s229 + $0x94] sm:$0xf]
        %v304 = vld [vmem:[%s229 + $0x98] sm:$0xf]
        %v305 = vld [vmem:[%s229 + $0x9c] sm:$0xf]
        %v306 = vld [vmem:[%s229 + $0xa0] sm:$0xf]
        %v307 = vld [vmem:[%s229 + $0xa4] sm:$0xf]
        %v308 = vld [vmem:[%s229 + $0xa8] sm:$0xf]
        %v309 = vld [vmem:[%s229 + $0xac] sm:$0xf]
        %v310 = vld [vmem:[%s229 + $0xb0] sm:$0xf]
        %v311 = vld [vmem:[%s229 + $0xb4] sm:$0xf]
        %v312 = vld [vmem:[%s229 + $0xb8] sm:$0xf]
        %v313 = vld [vmem:[%s229 + $0xbc] sm:$0xf]
        %v314 = vld [vmem:[%s229 + $0xc0] sm:$0xf]
        %v315 = vld [vmem:[%s229 + $0xc4] sm:$0xf]
        %v316 = vld [vmem:[%s229 + $0xc8] sm:$0xf]
        %v317 = vld [vmem:[%s229 + $0xcc] sm:$0xf]
        %v318 = vld [vmem:[%s229 + $0xd0] sm:$0xf]
        %v319 = vld [vmem:[%s229 + $0xd4] sm:$0xf]
        %v320 = vld [vmem:[%s229 + $0xd8] sm:$0xf]
        %v321 = vld [vmem:[%s229 + $0xdc] sm:$0xf]
        %v322 = vld [vmem:[%s229 + $0xe0] sm:$0xf]
        %v323 = vld [vmem:[%s229 + $0xe4] sm:$0xf]
        %v324 = vld [vmem:[%s229 + $0xe8] sm:$0xf]
        %v325 = vld [vmem:[%s229 + $0xec] sm:$0xf]
        %v326 = vld [vmem:[%s229 + $0xf0] sm:$0xf]
        %v327 = vld [vmem:[%s229 + $0xf4] sm:$0xf]
        %v328 = vld [vmem:[%s229 + $0xf8] sm:$0xf]
        %v329 = vld [vmem:[%s229 + $0xfc] sm:$0xf]
        %v330 = vld [vmem:[#allocation5] sm:$0xf]
        %v331 = vld [vmem:[#allocation5 + $0x4] sm:$0xf]
        %v332 = vld [vmem:[#allocation5 + $0x8] sm:$0xf]
        %v333 = vld [vmem:[#allocation5 + $0xc] sm:$0xf]
        %v334 = vld [vmem:[#allocation5 + $0x10] sm:$0xf]
        %v335 = vld [vmem:[#allocation5 + $0x14] sm:$0xf]
        %v336 = vld [vmem:[#allocation5 + $0x18] sm:$0xf]
        %v337 = vld [vmem:[#allocation5 + $0x1c] sm:$0xf]
        %v338 = vld [vmem:[#allocation5 + $0x20] sm:$0xf]
        %v339 = vld [vmem:[#allocation5 + $0x24] sm:$0xf]
        %v340 = vld [vmem:[#allocation5 + $0x28] sm:$0xf]
        %v341 = vld [vmem:[#allocation5 + $0x2c] sm:$0xf]
        %v342 = vld [vmem:[#allocation5 + $0x30] sm:$0xf]
        %v343 = vld [vmem:[#allocation5 + $0x34] sm:$0xf]
        %v344 = vld [vmem:[#allocation5 + $0x38] sm:$0xf]
        %v345 = vld [vmem:[#allocation5 + $0x3c] sm:$0xf]
        %v346 = vld [vmem:[#allocation7] sm:$0x1]
        %v348 = vperm.slane %v346, 0
        %v414 = vunpack.c.l.b16 %v266
        %v415 = vunpack.c.l.b16 %v267
        %v416 = vunpack.c.l.b16 %v268
        %v417 = vunpack.c.l.b16 %v269
        %v418 = vunpack.c.l.b16 %v270
        %v419 = vunpack.c.l.b16 %v271
        %v420 = vunpack.c.l.b16 %v272
        %v421 = vunpack.c.l.b16 %v273
        %v422 = vunpack.c.l.b16 %v274
        %v423 = vunpack.c.l.b16 %v275
        %v424 = vunpack.c.l.b16 %v276
        %v425 = vunpack.c.l.b16 %v277
        %v426 = vunpack.c.l.b16 %v278
        %v427 = vunpack.c.l.b16 %v279
        %v428 = vunpack.c.l.b16 %v280
        %v429 = vunpack.c.l.b16 %v281
        %v430 = vunpack.c.l.b16 %v282
        %v431 = vunpack.c.l.b16 %v283
        %v432 = vunpack.c.l.b16 %v284
        %v433 = vunpack.c.l.b16 %v285
        %v434 = vunpack.c.l.b16 %v286
        %v435 = vunpack.c.l.b16 %v287
        %v436 = vunpack.c.l.b16 %v288
        %v437 = vunpack.c.l.b16 %v289
        %v438 = vunpack.c.l.b16 %v290
        %v439 = vunpack.c.l.b16 %v291
        %v440 = vunpack.c.l.b16 %v292
        %v441 = vunpack.c.l.b16 %v293
        %v442 = vunpack.c.l.b16 %v294
        %v443 = vunpack.c.l.b16 %v295
        %v444 = vunpack.c.l.b16 %v296
        %v445 = vunpack.c.l.b16 %v297
        %v446 = vunpack.c.l.b16 %v298
        %v447 = vunpack.c.l.b16 %v299
        %v448 = vunpack.c.l.b16 %v300
        %v449 = vunpack.c.l.b16 %v301
        %v450 = vunpack.c.l.b16 %v302
        %v451 = vunpack.c.l.b16 %v303
        %v452 = vunpack.c.l.b16 %v304
        %v453 = vunpack.c.l.b16 %v305
        %v454 = vunpack.c.l.b16 %v306
        %v455 = vunpack.c.l.b16 %v307
        %v456 = vunpack.c.l.b16 %v308
        %v457 = vunpack.c.l.b16 %v309
        %v458 = vunpack.c.l.b16 %v310
        %v459 = vunpack.c.l.b16 %v311
        %v460 = vunpack.c.l.b16 %v312
        %v461 = vunpack.c.l.b16 %v313
        %v462 = vunpack.c.l.b16 %v314
        %v463 = vunpack.c.l.b16 %v315
        %v464 = vunpack.c.l.b16 %v316
        %v465 = vunpack.c.l.b16 %v317
        %v466 = vunpack.c.l.b16 %v318
        %v467 = vunpack.c.l.b16 %v319
        %v468 = vunpack.c.l.b16 %v320
        %v469 = vunpack.c.l.b16 %v321
        %v470 = vunpack.c.l.b16 %v322
        %v471 = vunpack.c.l.b16 %v323
        %v472 = vunpack.c.l.b16 %v324
        %v473 = vunpack.c.l.b16 %v325
        %v474 = vunpack.c.l.b16 %v326
        %v475 = vunpack.c.l.b16 %v327
        %v476 = vunpack.c.l.b16 %v328
        %v477 = vunpack.c.l.b16 %v329
        %v478 = vpack.c.b16 %v415, %v414
        %v479 = vpack.c.b16 %v417, %v416
        %v480 = vpack.c.b16 %v419, %v418
        %v481 = vpack.c.b16 %v421, %v420
        %v482 = vpack.c.b16 %v423, %v422
        %v483 = vpack.c.b16 %v425, %v424
        %v484 = vpack.c.b16 %v427, %v426
        %v485 = vpack.c.b16 %v429, %v428
        %v486 = vpack.c.b16 %v431, %v430
        %v487 = vpack.c.b16 %v433, %v432
        %v488 = vpack.c.b16 %v435, %v434
        %v489 = vpack.c.b16 %v437, %v436
        %v490 = vpack.c.b16 %v439, %v438
        %v491 = vpack.c.b16 %v441, %v440
        %v492 = vpack.c.b16 %v443, %v442
        %v493 = vpack.c.b16 %v445, %v444
        %v494 = vpack.c.b16 %v447, %v446
        %v495 = vpack.c.b16 %v449, %v448
        %v496 = vpack.c.b16 %v451, %v450
        %v497 = vpack.c.b16 %v453, %v452
        %v498 = vpack.c.b16 %v455, %v454
        %v499 = vpack.c.b16 %v457, %v456
        %v500 = vpack.c.b16 %v459, %v458
        %v501 = vpack.c.b16 %v461, %v460
        %v502 = vpack.c.b16 %v463, %v462
        %v503 = vpack.c.b16 %v465, %v464
        %v504 = vpack.c.b16 %v467, %v466
        %v505 = vpack.c.b16 %v469, %v468
        %v506 = vpack.c.b16 %v471, %v470
        %v507 = vpack.c.b16 %v473, %v472
        %v508 = vpack.c.b16 %v475, %v474
        %v509 = vpack.c.b16 %v477, %v476
        %v558 = vunpack.c.l.b16 %v330
        %v559 = vunpack.c.l.b16 %v331
        %v560 = vunpack.c.l.b16 %v332
        %v561 = vunpack.c.l.b16 %v333
        %v562 = vunpack.c.l.b16 %v334
        %v563 = vunpack.c.l.b16 %v335
        %v564 = vunpack.c.l.b16 %v336
        %v565 = vunpack.c.l.b16 %v337
        %v566 = vunpack.c.l.b16 %v338
        %v567 = vunpack.c.l.b16 %v339
        %v568 = vunpack.c.l.b16 %v340
        %v569 = vunpack.c.l.b16 %v341
        %v570 = vunpack.c.l.b16 %v342
        %v571 = vunpack.c.l.b16 %v343
        %v572 = vunpack.c.l.b16 %v344
        %v573 = vunpack.c.l.b16 %v345
        %v574 = vpack.c.b16 %v559, %v558
        %v575 = vpack.c.b16 %v561, %v560
        %v576 = vpack.c.b16 %v563, %v562
        %v577 = vpack.c.b16 %v565, %v564
        %v578 = vpack.c.b16 %v567, %v566
        %v579 = vpack.c.b16 %v569, %v568
        %v580 = vpack.c.b16 %v571, %v570
        %v581 = vpack.c.b16 %v573, %v572
        %590 = vmatpush.bf16.msra.mxu0 %v581
        %591 = vmatpush.bf16.msra.mxu0 %v580
        %592 = vmatpush.bf16.msra.mxu0 %v579
        %593 = vmatpush.bf16.msra.mxu0 %v578
        %594 = vmatpush.bf16.msra.mxu0 %v577
        %595 = vmatpush.bf16.msra.mxu0 %v576
        %596 = vmatpush.bf16.msra.mxu0 %v575
        %597 = vmatpush.bf16.msra.mxu0 %v574
        %598 = vmatmul.bf16.gmra.mxu0 %v478
        %v599 = vpop.f32.mrf.mxu0
        %v600 = vadd.f32 %v348, %v599
        %v601 = vpop.f32.mrf.mxu0
        %v602 = vadd.f32 %v348, %v601
        %603 = vmatmul.bf16.gmra.mxu0 %v479
        %v604 = vpop.f32.mrf.mxu0
        %v605 = vadd.f32 %v348, %v604
        %v606 = vpop.f32.mrf.mxu0
        %v607 = vadd.f32 %v348, %v606
        %608 = vmatmul.bf16.gmra.mxu0 %v480
        %v609 = vpop.f32.mrf.mxu0
        %v610 = vadd.f32 %v348, %v609
        %v611 = vpop.f32.mrf.mxu0
        %v612 = vadd.f32 %v348, %v611
        %613 = vmatmul.bf16.gmra.mxu0 %v481
        %v614 = vpop.f32.mrf.mxu0
        %v615 = vadd.f32 %v348, %v614
        %v616 = vpop.f32.mrf.mxu0
        %v617 = vadd.f32 %v348, %v616
        %618 = vmatmul.bf16.gmra.mxu0 %v482
        %v619 = vpop.f32.mrf.mxu0
        %v620 = vadd.f32 %v348, %v619
        %v621 = vpop.f32.mrf.mxu0
        %v622 = vadd.f32 %v348, %v621
        %623 = vmatmul.bf16.gmra.mxu0 %v483
        %v624 = vpop.f32.mrf.mxu0
        %v625 = vadd.f32 %v348, %v624
        %v626 = vpop.f32.mrf.mxu0
        %v627 = vadd.f32 %v348, %v626
        %628 = vmatmul.bf16.gmra.mxu0 %v484
        %v629 = vpop.f32.mrf.mxu0
        %v630 = vadd.f32 %v348, %v629
        %v631 = vpop.f32.mrf.mxu0
        %v632 = vadd.f32 %v348, %v631
        %633 = vmatmul.bf16.gmra.mxu0 %v485
        %v634 = vpop.f32.mrf.mxu0
        %v635 = vadd.f32 %v348, %v634
        %v636 = vpop.f32.mrf.mxu0
        %v637 = vadd.f32 %v348, %v636
        %638 = vmatmul.bf16.gmra.mxu0 %v486
        %v639 = vpop.f32.mrf.mxu0
        %v640 = vadd.f32 %v348, %v639
        %v641 = vpop.f32.mrf.mxu0
        %v642 = vadd.f32 %v348, %v641
        %643 = vmatmul.bf16.gmra.mxu0 %v487
        %v644 = vpop.f32.mrf.mxu0
        %v645 = vadd.f32 %v348, %v644
        %v646 = vpop.f32.mrf.mxu0
        %v647 = vadd.f32 %v348, %v646
        %648 = vmatmul.bf16.gmra.mxu0 %v488
        %v649 = vpop.f32.mrf.mxu0
        %v650 = vadd.f32 %v348, %v649
        %v651 = vpop.f32.mrf.mxu0
        %v652 = vadd.f32 %v348, %v651
        %653 = vmatmul.bf16.gmra.mxu0 %v489
        %v654 = vpop.f32.mrf.mxu0
        %v655 = vadd.f32 %v348, %v654
        %v656 = vpop.f32.mrf.mxu0
        %v657 = vadd.f32 %v348, %v656
        %658 = vmatmul.bf16.gmra.mxu0 %v490
        %v659 = vpop.f32.mrf.mxu0
        %v660 = vadd.f32 %v348, %v659
        %v661 = vpop.f32.mrf.mxu0
        %v662 = vadd.f32 %v348, %v661
        %663 = vmatmul.bf16.gmra.mxu0 %v491
        %v664 = vpop.f32.mrf.mxu0
        %v665 = vadd.f32 %v348, %v664
        %v666 = vpop.f32.mrf.mxu0
        %v667 = vadd.f32 %v348, %v666
        %668 = vmatmul.bf16.gmra.mxu0 %v492
        %v669 = vpop.f32.mrf.mxu0
        %v670 = vadd.f32 %v348, %v669
        %v671 = vpop.f32.mrf.mxu0
        %v672 = vadd.f32 %v348, %v671
        %673 = vmatmul.bf16.gmra.mxu0 %v493
        %v674 = vpop.f32.mrf.mxu0
        %v675 = vadd.f32 %v348, %v674
        %v676 = vpop.f32.mrf.mxu0
        %v677 = vadd.f32 %v348, %v676
        %678 = vmatmul.bf16.gmra.mxu0 %v494
        %v679 = vpop.f32.mrf.mxu0
        %v680 = vadd.f32 %v348, %v679
        %v681 = vpop.f32.mrf.mxu0
        %v682 = vadd.f32 %v348, %v681
        %683 = vmatmul.bf16.gmra.mxu0 %v495
        %v684 = vpop.f32.mrf.mxu0
        %v685 = vadd.f32 %v348, %v684
        %v686 = vpop.f32.mrf.mxu0
        %v687 = vadd.f32 %v348, %v686
        %688 = vmatmul.bf16.gmra.mxu0 %v496
        %v689 = vpop.f32.mrf.mxu0
        %v690 = vadd.f32 %v348, %v689
        %v691 = vpop.f32.mrf.mxu0
        %v692 = vadd.f32 %v348, %v691
        %693 = vmatmul.bf16.gmra.mxu0 %v497
        %v694 = vpop.f32.mrf.mxu0
        %v695 = vadd.f32 %v348, %v694
        %v696 = vpop.f32.mrf.mxu0
        %v697 = vadd.f32 %v348, %v696
        %698 = vmatmul.bf16.gmra.mxu0 %v498
        %v699 = vpop.f32.mrf.mxu0
        %v700 = vadd.f32 %v348, %v699
        %v701 = vpop.f32.mrf.mxu0
        %v702 = vadd.f32 %v348, %v701
        %703 = vmatmul.bf16.gmra.mxu0 %v499
        %v704 = vpop.f32.mrf.mxu0
        %v705 = vadd.f32 %v348, %v704
        %v706 = vpop.f32.mrf.mxu0
        %v707 = vadd.f32 %v348, %v706
        %708 = vmatmul.bf16.gmra.mxu0 %v500
        %v709 = vpop.f32.mrf.mxu0
        %v710 = vadd.f32 %v348, %v709
        %v711 = vpop.f32.mrf.mxu0
        %v712 = vadd.f32 %v348, %v711
        %713 = vmatmul.bf16.gmra.mxu0 %v501
        %v714 = vpop.f32.mrf.mxu0
        %v715 = vadd.f32 %v348, %v714
        %v716 = vpop.f32.mrf.mxu0
        %v717 = vadd.f32 %v348, %v716
        %718 = vmatmul.bf16.gmra.mxu0 %v502
        %v719 = vpop.f32.mrf.mxu0
        %v720 = vadd.f32 %v348, %v719
        %v721 = vpop.f32.mrf.mxu0
        %v722 = vadd.f32 %v348, %v721
        %723 = vmatmul.bf16.gmra.mxu0 %v503
        %v724 = vpop.f32.mrf.mxu0
        %v725 = vadd.f32 %v348, %v724
        %v726 = vpop.f32.mrf.mxu0
        %v727 = vadd.f32 %v348, %v726
        %728 = vmatmul.bf16.gmra.mxu0 %v504
        %v729 = vpop.f32.mrf.mxu0
        %v730 = vadd.f32 %v348, %v729
        %v731 = vpop.f32.mrf.mxu0
        %v732 = vadd.f32 %v348, %v731
        %733 = vmatmul.bf16.gmra.mxu0 %v505
        %v734 = vpop.f32.mrf.mxu0
        %v735 = vadd.f32 %v348, %v734
        %v736 = vpop.f32.mrf.mxu0
        %v737 = vadd.f32 %v348, %v736
        %738 = vmatmul.bf16.gmra.mxu0 %v506
        %v739 = vpop.f32.mrf.mxu0
        %v740 = vadd.f32 %v348, %v739
        %v741 = vpop.f32.mrf.mxu0
        %v742 = vadd.f32 %v348, %v741
        %743 = vmatmul.bf16.gmra.mxu0 %v507
        %v744 = vpop.f32.mrf.mxu0
        %v745 = vadd.f32 %v348, %v744
        %v746 = vpop.f32.mrf.mxu0
        %v747 = vadd.f32 %v348, %v746
        %748 = vmatmul.bf16.gmra.mxu0 %v508
        %v749 = vpop.f32.mrf.mxu0
        %v750 = vadd.f32 %v348, %v749
        %v751 = vpop.f32.mrf.mxu0
        %v752 = vadd.f32 %v348, %v751
        %753 = vmatmul.bf16.gmra.mxu0 %v509
        %v754 = vpop.f32.mrf.mxu0
        %v755 = vadd.f32 %v348, %v754
        %v756 = vpop.f32.mrf.mxu0
        %v757 = vadd.f32 %v348, %v756
        %758 = vdwg.mxu0
        %v759 = vmax.f32 %v600, 0.0
        %v760 = vmax.f32 %v602, 0.0
        %v761 = vmax.f32 %v605, 0.0
        %v762 = vmax.f32 %v607, 0.0
        %v763 = vmax.f32 %v610, 0.0
        %v764 = vmax.f32 %v612, 0.0
        %v765 = vmax.f32 %v615, 0.0
        %v766 = vmax.f32 %v617, 0.0
        %v767 = vmax.f32 %v620, 0.0
        %v768 = vmax.f32 %v622, 0.0
        %v769 = vmax.f32 %v625, 0.0
        %v770 = vmax.f32 %v627, 0.0
        %v771 = vmax.f32 %v630, 0.0
        %v772 = vmax.f32 %v632, 0.0
        %v773 = vmax.f32 %v635, 0.0
        %v774 = vmax.f32 %v637, 0.0
        %v775 = vmax.f32 %v640, 0.0
        %v776 = vmax.f32 %v642, 0.0
        %v777 = vmax.f32 %v645, 0.0
        %v778 = vmax.f32 %v647, 0.0
        %v779 = vmax.f32 %v650, 0.0
        %v780 = vmax.f32 %v652, 0.0
        %v781 = vmax.f32 %v655, 0.0
        %v782 = vmax.f32 %v657, 0.0
        %v783 = vmax.f32 %v660, 0.0
        %v784 = vmax.f32 %v662, 0.0
        %v785 = vmax.f32 %v665, 0.0
        %v786 = vmax.f32 %v667, 0.0
        %v787 = vmax.f32 %v670, 0.0
        %v788 = vmax.f32 %v672, 0.0
        %v789 = vmax.f32 %v675, 0.0
        %v790 = vmax.f32 %v677, 0.0
        %v791 = vmax.f32 %v680, 0.0
        %v792 = vmax.f32 %v682, 0.0
        %v793 = vmax.f32 %v685, 0.0
        %v794 = vmax.f32 %v687, 0.0
        %v795 = vmax.f32 %v690, 0.0
        %v796 = vmax.f32 %v692, 0.0
        %v797 = vmax.f32 %v695, 0.0
        %v798 = vmax.f32 %v697, 0.0
        %v799 = vmax.f32 %v700, 0.0
        %v800 = vmax.f32 %v702, 0.0
        %v801 = vmax.f32 %v705, 0.0
        %v802 = vmax.f32 %v707, 0.0
        %v803 = vmax.f32 %v710, 0.0
        %v804 = vmax.f32 %v712, 0.0
        %v805 = vmax.f32 %v715, 0.0
        %v806 = vmax.f32 %v717, 0.0
        %v807 = vmax.f32 %v720, 0.0
        %v808 = vmax.f32 %v722, 0.0
        %v809 = vmax.f32 %v725, 0.0
        %v810 = vmax.f32 %v727, 0.0
        %v811 = vmax.f32 %v730, 0.0
        %v812 = vmax.f32 %v732, 0.0
        %v813 = vmax.f32 %v735, 0.0
        %v814 = vmax.f32 %v737, 0.0
        %v815 = vmax.f32 %v740, 0.0
        %v816 = vmax.f32 %v742, 0.0
        %v817 = vmax.f32 %v745, 0.0
        %v818 = vmax.f32 %v747, 0.0
        %v819 = vmax.f32 %v750, 0.0
        %v820 = vmax.f32 %v752, 0.0
        %v821 = vmax.f32 %v755, 0.0
        %v822 = vmax.f32 %v757, 0.0
        %v823 = vpack.c.bf16 %v759, %v759
        %v824 = vpack.c.bf16 %v760, %v760
        %v825 = vpack.c.bf16 %v761, %v761
        %v826 = vpack.c.bf16 %v762, %v762
        %v827 = vpack.c.bf16 %v763, %v763
        %v828 = vpack.c.bf16 %v764, %v764
        %v829 = vpack.c.bf16 %v765, %v765
        %v830 = vpack.c.bf16 %v766, %v766
        %v831 = vpack.c.bf16 %v767, %v767
        %v832 = vpack.c.bf16 %v768, %v768
        %v833 = vpack.c.bf16 %v769, %v769
        %v834 = vpack.c.bf16 %v770, %v770
        %v835 = vpack.c.bf16 %v771, %v771
        %v836 = vpack.c.bf16 %v772, %v772
        %v837 = vpack.c.bf16 %v773, %v773
        %v838 = vpack.c.bf16 %v774, %v774
        %v839 = vpack.c.bf16 %v775, %v775
        %v840 = vpack.c.bf16 %v776, %v776
        %v841 = vpack.c.bf16 %v777, %v777
        %v842 = vpack.c.bf16 %v778, %v778
        %v843 = vpack.c.bf16 %v779, %v779
        %v844 = vpack.c.bf16 %v780, %v780
        %v845 = vpack.c.bf16 %v781, %v781
        %v846 = vpack.c.bf16 %v782, %v782
        %v847 = vpack.c.bf16 %v783, %v783
        %v848 = vpack.c.bf16 %v784, %v784
        %v849 = vpack.c.bf16 %v785, %v785
        %v850 = vpack.c.bf16 %v786, %v786
        %v851 = vpack.c.bf16 %v787, %v787
        %v852 = vpack.c.bf16 %v788, %v788
        %v853 = vpack.c.bf16 %v789, %v789
        %v854 = vpack.c.bf16 %v790, %v790
        %v855 = vpack.c.bf16 %v791, %v791
        %v856 = vpack.c.bf16 %v792, %v792
        %v857 = vpack.c.bf16 %v793, %v793
        %v858 = vpack.c.bf16 %v794, %v794
        %v859 = vpack.c.bf16 %v795, %v795
        %v860 = vpack.c.bf16 %v796, %v796
        %v861 = vpack.c.bf16 %v797, %v797
        %v862 = vpack.c.bf16 %v798, %v798
        %v863 = vpack.c.bf16 %v799, %v799
        %v864 = vpack.c.bf16 %v800, %v800
        %v865 = vpack.c.bf16 %v801, %v801
        %v866 = vpack.c.bf16 %v802, %v802
        %v867 = vpack.c.bf16 %v803, %v803
        %v868 = vpack.c.bf16 %v804, %v804
        %v869 = vpack.c.bf16 %v805, %v805
        %v870 = vpack.c.bf16 %v806, %v806
        %v871 = vpack.c.bf16 %v807, %v807
        %v872 = vpack.c.bf16 %v808, %v808
        %v873 = vpack.c.bf16 %v809, %v809
        %v874 = vpack.c.bf16 %v810, %v810
        %v875 = vpack.c.bf16 %v811, %v811
        %v876 = vpack.c.bf16 %v812, %v812
        %v877 = vpack.c.bf16 %v813, %v813
        %v878 = vpack.c.bf16 %v814, %v814
        %v879 = vpack.c.bf16 %v815, %v815
        %v880 = vpack.c.bf16 %v816, %v816
        %v881 = vpack.c.bf16 %v817, %v817
        %v882 = vpack.c.bf16 %v818, %v818
        %v883 = vpack.c.bf16 %v819, %v819
        %v884 = vpack.c.bf16 %v820, %v820
        %v885 = vpack.c.bf16 %v821, %v821
        %v886 = vpack.c.bf16 %v822, %v822
        %887 = vst [vmem:[%s262] sm:$0xf] %v823
        %888 = vst [vmem:[%s262 + $0x4] sm:$0xf] %v824
        %889 = vst [vmem:[%s262 + $0x8] sm:$0xf] %v825
        %890 = vst [vmem:[%s262 + $0xc] sm:$0xf] %v826
        %891 = vst [vmem:[%s262 + $0x10] sm:$0xf] %v827
        %892 = vst [vmem:[%s262 + $0x14] sm:$0xf] %v828
        %893 = vst [vmem:[%s262 + $0x18] sm:$0xf] %v829
        %894 = vst [vmem:[%s262 + $0x1c] sm:$0xf] %v830
        %895 = vst [vmem:[%s262 + $0x20] sm:$0xf] %v831
        %896 = vst [vmem:[%s262 + $0x24] sm:$0xf] %v832
        %897 = vst [vmem:[%s262 + $0x28] sm:$0xf] %v833
        %898 = vst [vmem:[%s262 + $0x2c] sm:$0xf] %v834
        %899 = vst [vmem:[%s262 + $0x30] sm:$0xf] %v835
        %900 = vst [vmem:[%s262 + $0x34] sm:$0xf] %v836
        %901 = vst [vmem:[%s262 + $0x38] sm:$0xf] %v837
        %902 = vst [vmem:[%s262 + $0x3c] sm:$0xf] %v838
        %903 = vst [vmem:[%s262 + $0x40] sm:$0xf] %v839
        %904 = vst [vmem:[%s262 + $0x44] sm:$0xf] %v840
        %905 = vst [vmem:[%s262 + $0x48] sm:$0xf] %v841
        %906 = vst [vmem:[%s262 + $0x4c] sm:$0xf] %v842
        %907 = vst [vmem:[%s262 + $0x50] sm:$0xf] %v843
        %908 = vst [vmem:[%s262 + $0x54] sm:$0xf] %v844
        %909 = vst [vmem:[%s262 + $0x58] sm:$0xf] %v845
        %910 = vst [vmem:[%s262 + $0x5c] sm:$0xf] %v846
        %911 = vst [vmem:[%s262 + $0x60] sm:$0xf] %v847
        %912 = vst [vmem:[%s262 + $0x64] sm:$0xf] %v848
        %913 = vst [vmem:[%s262 + $0x68] sm:$0xf] %v849
        %914 = vst [vmem:[%s262 + $0x6c] sm:$0xf] %v850
        %915 = vst [vmem:[%s262 + $0x70] sm:$0xf] %v851
        %916 = vst [vmem:[%s262 + $0x74] sm:$0xf] %v852
        %917 = vst [vmem:[%s262 + $0x78] sm:$0xf] %v853
        %918 = vst [vmem:[%s262 + $0x7c] sm:$0xf] %v854
        %919 = vst [vmem:[%s262 + $0x80] sm:$0xf] %v855
        %920 = vst [vmem:[%s262 + $0x84] sm:$0xf] %v856
        %921 = vst [vmem:[%s262 + $0x88] sm:$0xf] %v857
        %922 = vst [vmem:[%s262 + $0x8c] sm:$0xf] %v858
        %923 = vst [vmem:[%s262 + $0x90] sm:$0xf] %v859
        %924 = vst [vmem:[%s262 + $0x94] sm:$0xf] %v860
        %925 = vst [vmem:[%s262 + $0x98] sm:$0xf] %v861
        %926 = vst [vmem:[%s262 + $0x9c] sm:$0xf] %v862
        %927 = vst [vmem:[%s262 + $0xa0] sm:$0xf] %v863
        %928 = vst [vmem:[%s262 + $0xa4] sm:$0xf] %v864
        %929 = vst [vmem:[%s262 + $0xa8] sm:$0xf] %v865
        %930 = vst [vmem:[%s262 + $0xac] sm:$0xf] %v866
        %931 = vst [vmem:[%s262 + $0xb0] sm:$0xf] %v867
        %932 = vst [vmem:[%s262 + $0xb4] sm:$0xf] %v868
        %933 = vst [vmem:[%s262 + $0xb8] sm:$0xf] %v869
        %934 = vst [vmem:[%s262 + $0xbc] sm:$0xf] %v870
        %935 = vst [vmem:[%s262 + $0xc0] sm:$0xf] %v871
        %936 = vst [vmem:[%s262 + $0xc4] sm:$0xf] %v872
        %937 = vst [vmem:[%s262 + $0xc8] sm:$0xf] %v873
        %938 = vst [vmem:[%s262 + $0xcc] sm:$0xf] %v874
        %939 = vst [vmem:[%s262 + $0xd0] sm:$0xf] %v875
        %940 = vst [vmem:[%s262 + $0xd4] sm:$0xf] %v876
        %941 = vst [vmem:[%s262 + $0xd8] sm:$0xf] %v877
        %942 = vst [vmem:[%s262 + $0xdc] sm:$0xf] %v878
        %943 = vst [vmem:[%s262 + $0xe0] sm:$0xf] %v879
        %944 = vst [vmem:[%s262 + $0xe4] sm:$0xf] %v880
        %945 = vst [vmem:[%s262 + $0xe8] sm:$0xf] %v881
        %946 = vst [vmem:[%s262 + $0xec] sm:$0xf] %v882
        %947 = vst [vmem:[%s262 + $0xf0] sm:$0xf] %v883
        %948 = vst [vmem:[%s262 + $0xf4] sm:$0xf] %v884
        %949 = vst [vmem:[%s262 + $0xf8] sm:$0xf] %v885
        %950 = vst [vmem:[%s262 + $0xfc] sm:$0xf] %v886
        %s951 = sand.u32 %s132, 1
        %s952 = scalar_lea.sflag [#allocation4], %s951
        %s953 = sand.u32 %s132, 1
        %s954 = smul.addr %s953, 256
        %s955 = scalar_lea.vmem [#allocation8], %s954
        // Predicated region
        $region45: #{tpu_custom_call.1} parent=31 // pred_check
          %p956 = pneg %p142
        $region46: #{tpu_custom_call.1} parent=31 // pred_check_branch
          %958 = sbr.rel (%p956) target = $region48
        $region47: #{tpu_custom_call.1} parent=31 // pred_region
          %s959 = smul.u32 64, %s26
          %961 = vsyncadd %s952, 0
          %s962 = sadd.s32 %s27, %s959
          %s963 = smul.addr %s962, 4
          %s964 = scalar_lea.hbm %s3, %s963
          %s965 = sshll.u32 %s955, 4
          %s966 = int_to_ptr.vmem [resolvable:$true] %s965
          %s967 = sshll.u32 %s964, 4
          %s968 = int_to_ptr.hbm [resolvable:$true] %s967
          %973 = dma.vmem_to_hbm [thread:$0]  %s966, 4096, %s968, %s952, 64, 64, 4
        $region48: #{tpu_custom_call.1} parent=31 // pred_fallthru
          _
      $region32: #{tpu_custom_call.1} parent=5 // pred_fallthru
        _
      %p974 = scmp.le.s32.totalorder 2, %s16
      // Predicated region
      $region49: #{tpu_custom_call.1} parent=5 // pred_check
        %p975 = pneg %p974
      $region50: #{tpu_custom_call.1} parent=5 // pred_check_branch
        %977 = sbr.rel (%p975) target = $region52
      $region51: #{tpu_custom_call.1} parent=5 // pred_region
        %s978 = ssub.s32 %s16, 2
        // Predicated region
        $region53: #{tpu_custom_call.1} parent=51 // pred_check
          %p979 = pneg %p148
        $region54: #{tpu_custom_call.1} parent=51 // pred_check_branch
          %981 = sbr.rel (%p979) target = $region56
        $region55: #{tpu_custom_call.1} parent=51 // pred_region
          %s982 = sand.u32 %s133, 1
          %s983 = scalar_lea.sflag [#allocation4], %s982
          %s984 = sand.u32 %s133, 1
          %s985 = smul.addr %s984, 256
          %s986 = scalar_lea.vmem [#allocation8], %s985
          %988 = dma.done %s983, 4096
        $region56: #{tpu_custom_call.1} parent=51 // pred_fallthru
          _
      $region52: #{tpu_custom_call.1} parent=5 // pred_fallthru
        _
    $region6: #{tpu_custom_call.1} parent=1 // loop_footer
      %s20 = sadd.s32 1, %s16
    $region7: #{tpu_custom_call.1} parent=1 // loop_footer_branch
      %15 = sbr.rel target = $region3
    $region8: #{tpu_custom_call.1} parent=1 // loop_exit
      _
    %989 = vsyncpa [#allocation3], 1
    %s990 = scalar_lea.sflag [#allocation3], 1
    %991 = vsyncpa %s990, 1
    %992 = vsyncpa [#allocation6], 1
    %993 = vsyncpa [#allocation4], 1
    %s994 = scalar_lea.sflag [#allocation4], 1
    %995 = vsyncpa %s994, 1

</llo_original>
